<compile_context>
chip_gen: v5e
topology: v5e:2x2
jax: 0.10.0
libtpu: 0.0.40
codegen_flags: <defaults>
</compile_context>

<pallas_src>
import functools

import jax
import jax.numpy as jnp
from jax.experimental import pallas as pl
from jax.experimental.pallas import tpu as pltpu


def _joints_mse_kernel(*refs, use_weight):
    """One row-tile of the flattened (B*J, HW) heatmaps.

    p_ref, g_ref : (TR, HW) VMEM tiles (native layout, rows are (b, j) pairs)
    w_ref        : (TR, 1)  VMEM tile of per-(b, j) weights (only if use_weight)
    o_ref        : (8, 128) VMEM partial-sum block for this grid step
    """
    if use_weight:
        p_ref, g_ref, w_ref, o_ref = refs
    else:
        p_ref, g_ref, o_ref = refs
        w_ref = None

    p = p_ref[...].astype(jnp.float32)
    g = g_ref[...].astype(jnp.float32)
    d = p - g
    sq = d * d
    if use_weight:
        w = w_ref[...].astype(jnp.float32)        # (TR, 1)
        sq = sq * (w * w)                         # lane-broadcast over HW

    s = jnp.sum(sq)                               # per-block partial sum (scalar)

    # Write the partial into slot [0, 0] of a lane-dense (8, 128) output block
    # (rest zeros); the wrapper sums all blocks afterwards.
    row = jax.lax.broadcasted_iota(jnp.int32, (8, 128), 0)
    col = jax.lax.broadcasted_iota(jnp.int32, (8, 128), 1)
    o_ref[...] = jnp.where((row == 0) & (col == 0), s, 0.0).astype(jnp.float32)


def _divisors(n):
    ds = []
    i = 1
    while i * i <= n:
        if n % i == 0:
            ds.append(i)
            ds.append(n // i)
        i += 1
    return ds


def _choose_row_tile(num_rows, bytes_per_row, budget_bytes=2 << 20):
    """Pick a row-tile size: whole problem if it fits, else a multiple-of-8 divisor."""
    if num_rows * bytes_per_row <= budget_bytes:
        return num_rows
    cap = max(8, budget_bytes // bytes_per_row)
    cands = [d for d in _divisors(num_rows) if d % 8 == 0 and d <= cap]
    if cands:
        return max(cands)
    # Fallback: single block covering everything; VMEM limit is raised below.
    return num_rows


def joints_mse_loss(output, target, target_weight, use_target_weight=True):
    """output, target: (B, J, H, W); target_weight: (B, J, 1). Returns scalar f32."""
    B, J, H, W = output.shape
    HW = H * W
    R = B * J

    # Free reshapes of the native layout -- no transpose, no extra HBM pass.
    pred = output.reshape(R, HW)
    gt = target.reshape(R, HW)

    itemsize = jnp.dtype(output.dtype).itemsize
    TR = _choose_row_tile(R, HW * itemsize)
    nb = R // TR
    assert nb * TR == R

    in_specs = [
        pl.BlockSpec((TR, HW), lambda i: (i, 0)),
        pl.BlockSpec((TR, HW), lambda i: (i, 0)),
    ]
    args = [pred, gt]
    if use_target_weight:
        in_specs.append(pl.BlockSpec((TR, 1), lambda i: (i, 0)))
        args.append(target_weight.reshape(R, 1))

    kernel = functools.partial(_joints_mse_kernel, use_weight=use_target_weight)

    # 2 inputs x 2 pipeline buffers + f32 working set; raise scoped VMEM only if needed.
    compiler_kwargs = {"dimension_semantics": ("parallel",)}
    est_vmem = 4 * TR * HW * itemsize + 2 * TR * HW * 4
    if est_vmem > (14 << 20):
        compiler_kwargs["vmem_limit_bytes"] = int(min(est_vmem + (16 << 20), 60 << 20))

    partials = pl.pallas_call(
        kernel,
        out_shape=jax.ShapeDtypeStruct((nb * 8, 128), jnp.float32),
        grid=(nb,),
        in_specs=in_specs,
        out_specs=pl.BlockSpec((8, 128), lambda i: (i, 0)),
        compiler_params=pltpu.CompilerParams(**compiler_kwargs),
    )(*args)

    # Tiny epilogue: sum per-block partials and apply 0.5 / (J * B * HW).
    return jnp.sum(partials) * jnp.float32(0.5 / (J * B * HW))


def _reference(output, target, target_weight, use_target_weight=True):
    """Pure-JAX reference mirroring the PyTorch loop."""
    B, J, H, W = output.shape
    hp = output.reshape(B, J, -1)
    hg = target.reshape(B, J, -1)
    loss = 0.0
    for idx in range(J):
        p = hp[:, idx, :]
        g = hg[:, idx, :]
        if use_target_weight:
            wj = target_weight[:, idx]          # (B, 1)
            p = p * wj
            g = g * wj
        loss += 0.5 * jnp.mean((p - g) ** 2)
    return loss / J


if __name__ == "__main__":
    key = jax.random.PRNGKey(0)
    k1, k2, k3 = jax.random.split(key, 3)

    B, J, H, W = 2, 4, 16, 16
    output = jax.random.normal(k1, (B, J, H, W), dtype=jnp.float32)
    target = jax.random.normal(k2, (B, J, H, W), dtype=jnp.float32)
    target_weight = jax.random.uniform(k3, (B, J, 1), dtype=jnp.float32)

    loss = jax.block_until_ready(
        joints_mse_loss(output, target, target_weight, use_target_weight=True)
    )
    ref = _reference(output, target, target_weight, use_target_weight=True)
    assert jnp.allclose(loss, ref, rtol=1e-5, atol=1e-6), (loss, ref)

    # Also exercise the use_target_weight=False path (no weight input / DMA).
    loss_nw = jax.block_until_ready(
        joints_mse_loss(output, target, target_weight, use_target_weight=False)
    )
    ref_nw = _reference(output, target, target_weight, use_target_weight=False)
    assert jnp.allclose(loss_nw, ref_nw, rtol=1e-5, atol=1e-6), (loss_nw, ref_nw)

    print("KERNEL_OK")
</pallas_src>

<mosaic_0001>
module attributes {stable_mosaic.version = 11 : i64} {
  func.func @_joints_mse_kernel(%arg0: i32, %arg1: memref<8x256xf32, #tpu.memory_space<vmem>>, %arg2: memref<8x256xf32, #tpu.memory_space<vmem>>, %arg3: memref<8x1xf32, #tpu.memory_space<vmem>>, %arg4: memref<8x128xf32, #tpu.memory_space<vmem>>) attributes {dimension_semantics = [#tpu.dimension_semantics<parallel>], iteration_bounds = array<i64: 1>, scalar_prefetch = 0 : i64, scratch_operands = 0 : i64, tpu.core_type = #tpu.core_type<tc>, window_params = [{transform_indices = @transform_0, window_bounds = array<i64: 8, 256>}, {transform_indices = @transform_1, window_bounds = array<i64: 8, 256>}, {transform_indices = @transform_2, window_bounds = array<i64: 8, 1>}, {transform_indices = @transform_3, window_bounds = array<i64: 8, 128>}]} {
    %c0 = arith.constant 0 : index
    %c0_0 = arith.constant 0 : index
    %0 = vector.load %arg1[%c0, %c0_0] : memref<8x256xf32, #tpu.memory_space<vmem>>, vector<8x256xf32>
    %c0_1 = arith.constant 0 : index
    %c0_2 = arith.constant 0 : index
    %1 = vector.load %arg2[%c0_1, %c0_2] : memref<8x256xf32, #tpu.memory_space<vmem>>, vector<8x256xf32>
    %2 = arith.subf %0, %1 : vector<8x256xf32>
    %3 = arith.mulf %2, %2 : vector<8x256xf32>
    %c0_3 = arith.constant 0 : index
    %c0_4 = arith.constant 0 : index
    %4 = vector.load %arg3[%c0_3, %c0_4] : memref<8x1xf32, #tpu.memory_space<vmem>>, vector<8x1xf32>
    %5 = arith.mulf %4, %4 : vector<8x1xf32>
    %6 = vector.broadcast %5 : vector<8x1xf32> to vector<8x256xf32>
    %7 = arith.mulf %3, %6 : vector<8x256xf32>
    %8 = vector.shape_cast %7 : vector<8x256xf32> to vector<1x8x256xf32>
    %cst = arith.constant dense<0.000000e+00> : vector<1xf32>
    %9 = vector.multi_reduction <add>, %8, %cst [1, 2] : vector<1x8x256xf32> to vector<1xf32>
    %10 = vector.shape_cast %9 : vector<1xf32> to vector<1x1x1xf32>
    %11 = vector.extract %10[0, 0, 0] : f32 from vector<1x1x1xf32>
    %12 = tpu.iota {dimensions = array<i32: 0>} : vector<8x128xi32>
    %13 = tpu.iota {dimensions = array<i32: 1>} : vector<8x128xi32>
    %c0_i32 = arith.constant 0 : i32
    %14 = vector.broadcast %c0_i32 : i32 to vector<8x128xi32>
    %15 = arith.cmpi eq, %12, %14 : vector<8x128xi32>
    %c0_i32_5 = arith.constant 0 : i32
    %16 = vector.broadcast %c0_i32_5 : i32 to vector<8x128xi32>
    %17 = arith.cmpi eq, %13, %16 : vector<8x128xi32>
    %18 = arith.andi %15, %17 : vector<8x128xi1>
    %cst_6 = arith.constant 0.000000e+00 : f32
    %19 = vector.broadcast %11 : f32 to vector<8x128xf32>
    %20 = vector.broadcast %cst_6 : f32 to vector<8x128xf32>
    %21 = arith.select %18, %19, %20 : vector<8x128xi1>, vector<8x128xf32>
    %c0_7 = arith.constant 0 : index
    %c0_8 = arith.constant 0 : index
    %22 = vector.load %arg4[%c0_7, %c0_8] : memref<8x128xf32, #tpu.memory_space<vmem>>, vector<8x128xf32>
    tpu.vector_store %arg4[%c0_7, %c0_8], %21 {strides = array<i32>} : memref<8x128xf32, #tpu.memory_space<vmem>>, vector<8x128xf32>,
    return
  }
  func.func @transform_0(%arg0: i32) -> (i32, i32) {
    %c0_i32 = arith.constant 0 : i32
    %c0_i32_0 = arith.constant 0 : i32
    return %arg0, %c0_i32 : i32, i32
  }
  func.func @transform_1(%arg0: i32) -> (i32, i32) {
    %c0_i32 = arith.constant 0 : i32
    %c0_i32_0 = arith.constant 0 : i32
    return %arg0, %c0_i32 : i32, i32
  }
  func.func @transform_2(%arg0: i32) -> (i32, i32) {
    %c0_i32 = arith.constant 0 : i32
    %c0_i32_0 = arith.constant 0 : i32
    return %arg0, %c0_i32 : i32, i32
  }
  func.func @transform_3(%arg0: i32) -> (i32, i32) {
    %c0_i32 = arith.constant 0 : i32
    %c0_i32_0 = arith.constant 0 : i32
    return %arg0, %c0_i32 : i32, i32
  }
}

</mosaic_0001>

<llo_original>
// kernel: tpu_custom_call.1
$region0: #{tpu_custom_call.1}
  #allocation0 [shape = 'u32[]', space=smem, size = 0x4, offset = 0x4, fixed_abs, tag = 'smem constant byte address 0x4 - core index']
  #allocation1 [shape = 'u32[72,128]{1,0:T(1,128)}', space=vmem, size = 0x9000, scoped, tag = 'internal scratch']
  %s0 = inlined_call_operand.hbm [shape: f32[8,256], index: 0, kind: input, shape index: {}]
  %s1 = inlined_call_operand.hbm [shape: f32[8,256], index: 1, kind: input, shape index: {}]
  %s2 = inlined_call_operand.vmem [shape: f32[8,1], index: 2, kind: input, shape index: {}]
  %s3 = inlined_call_operand.hbm [shape: f32[8,128], index: 3, kind: output, shape index: {}]
  %s4 = sld [smem:[#allocation0]]
  $region30: #{tpu_custom_call.1} parent=0
    _
  %s6 = ssub.s32 1, %s4
  %s7 = scalar_select 0, %s6, %s4
  $region1: #{tpu_custom_call.1} parent=0
    #allocation2 [shape = 'u8[8192]{0}', space=vmem, size = 0x2000, scoped, tag = 'input window, operand 0, single buffered']
    #allocation3 [shape = 's32[1]{0}', space=sflag, size = 0x4, scoped, tag = 'scoped memory for tpu_custom_call.1']
    #allocation4 [shape = 's32[1]{0}', space=sflag, size = 0x4, scoped, tag = 'scoped memory for tpu_custom_call.1']
    #allocation5 [shape = 'u8[8192]{0}', space=vmem, size = 0x2000, scoped, tag = 'input window, operand 1, single buffered']
    #allocation6 [shape = 's32[1]{0}', space=sflag, size = 0x4, scoped, tag = 'scoped memory for tpu_custom_call.1']
    #allocation7 [shape = 'u8[4096]{0}', space=vmem, size = 0x1000, scoped, tag = 'output window, operand 0, single buffered']
    %8 = vsyncpa [#allocation3], 0
    %9 = vsyncpa [#allocation6], 0
    %10 = vsyncpa [#allocation4], 0
    // Predicated region
    $region2: #{tpu_custom_call.1} parent=1 // pred_check
      _
    $region3: #{tpu_custom_call.1} parent=1 // pred_check_branch
      %12 = sbr.rel (0) target = $region5
    $region4: #{tpu_custom_call.1} parent=1 // pred_region
      %14 = vsyncadd [#allocation3], 0
      %s16 = sshll.u32 %s0, 4
      %s17 = int_to_ptr.hbm [resolvable:$true] %s16
      %s18 = sshll.u32 [#allocation2], 4
      %s19 = int_to_ptr.vmem [resolvable:$true] %s18
      %21 = dma.hbm_to_vmem [thread:$0]  %s17, 256, %s19, [#allocation3]
    $region5: #{tpu_custom_call.1} parent=1 // pred_fallthru
      _
    // Predicated region
    $region6: #{tpu_custom_call.1} parent=1 // pred_check
      _
    $region7: #{tpu_custom_call.1} parent=1 // pred_check_branch
      %23 = sbr.rel (0) target = $region9
    $region8: #{tpu_custom_call.1} parent=1 // pred_region
      %25 = vsyncadd [#allocation6], 0
      %s27 = sshll.u32 %s1, 4
      %s28 = int_to_ptr.hbm [resolvable:$true] %s27
      %s29 = sshll.u32 [#allocation5], 4
      %s30 = int_to_ptr.vmem [resolvable:$true] %s29
      %32 = dma.hbm_to_vmem [thread:$0]  %s28, 256, %s30, [#allocation6]
    $region9: #{tpu_custom_call.1} parent=1 // pred_fallthru
      _
    // Predicated region
    $region10: #{tpu_custom_call.1} parent=1 // pred_check
      _
    $region11: #{tpu_custom_call.1} parent=1 // pred_check_branch
      %34 = sbr.rel (0) target = $region13
    $region12: #{tpu_custom_call.1} parent=1 // pred_region
      _
    $region13: #{tpu_custom_call.1} parent=1 // pred_fallthru
      _
    // Predicated region
    $region14: #{tpu_custom_call.1} parent=1 // pred_check
      _
    $region15: #{tpu_custom_call.1} parent=1 // pred_check_branch
      %36 = sbr.rel (0) target = $region17
    $region16: #{tpu_custom_call.1} parent=1 // pred_region
      %38 = dma.done [#allocation3], 256
    $region17: #{tpu_custom_call.1} parent=1 // pred_fallthru
      _
    // Predicated region
    $region18: #{tpu_custom_call.1} parent=1 // pred_check
      _
    $region19: #{tpu_custom_call.1} parent=1 // pred_check_branch
      %40 = sbr.rel (0) target = $region21
    $region20: #{tpu_custom_call.1} parent=1 // pred_region
      %42 = dma.done [#allocation6], 256
    $region21: #{tpu_custom_call.1} parent=1 // pred_fallthru
      _
    %v43 = vld [vmem:[#allocation2] sm:$0xff]
    %v44 = vld [vmem:[#allocation2 + $0x8] sm:$0xff]
    %v45 = vld [vmem:[#allocation5] sm:$0xff]
    %v46 = vld [vmem:[#allocation5 + $0x8] sm:$0xff]
    %v47 = vsub.f32 %v43, %v45
    %v48 = vsub.f32 %v44, %v46
    %v49 = vmul.f32 %v47, %v47
    %v50 = vmul.f32 %v48, %v48
    %v51 = vld [vmem:[%s2] sm:$0xff]
    %v52 = vmul.f32 %v51, %v51
    %54 = vset.pattern.permute.xlu0 0
    %55 = vperm.xlu0 %54, %v52
    %v56 = vpop.permute.xlu0 %55
    %v58 = vmul.f32 %v49, %v56
    %v59 = vmul.f32 %v50, %v56
    %v60 = vadd.f32 %v58, %v59
    %61 = vadd.xlane.f32.xlu0 %v60
    %v62 = vpop.xlane.xlu0 %61
    %v63 = vrot.slane %v62, 4
    %v64 = vadd.f32 %v62, %v63
    %v65 = vrot.slane %v64, 2
    %v66 = vadd.f32 %v64, %v65
    %v67 = vrot.slane %v66, 1
    %v68 = vadd.f32 %v66, %v67
    %s69 = vtos %v68
    %v70 = vlaneseq
    %v71 = vshrl.u32 %v70, 7
    %v72 = vlaneseq
    %v73 = vand.u32 %v72, 127
    %vm74 = vcmp.eq.s32.totalorder %v71, 0
    %vm75 = vcmp.eq.s32.totalorder %v73, 0
    %vm76 = vmand %vm74, %vm75
    %v77 = vstv %s69
    %v78 = vsel %vm76, %v77, 0.0
    %79 = vst [vmem:[#allocation7] sm:$0xff] %v78
    // Predicated region
    $region22: #{tpu_custom_call.1} parent=1 // pred_check
      _
    $region23: #{tpu_custom_call.1} parent=1 // pred_check_branch
      %81 = sbr.rel (0) target = $region25
    $region24: #{tpu_custom_call.1} parent=1 // pred_region
      %83 = vsyncadd [#allocation4], 0
      %s85 = sshll.u32 [#allocation7], 4
      %s86 = int_to_ptr.vmem [resolvable:$true] %s85
      %s87 = sshll.u32 %s3, 4
      %s88 = int_to_ptr.hbm [resolvable:$true] %s87
      %90 = dma.vmem_to_hbm [thread:$0]  %s86, 128, %s88, [#allocation4]
    $region25: #{tpu_custom_call.1} parent=1 // pred_fallthru
      _
    // Predicated region
    $region26: #{tpu_custom_call.1} parent=1 // pred_check
      _
    $region27: #{tpu_custom_call.1} parent=1 // pred_check_branch
      %92 = sbr.rel (0) target = $region29
    $region28: #{tpu_custom_call.1} parent=1 // pred_region
      %94 = dma.done [#allocation4], 128
    $region29: #{tpu_custom_call.1} parent=1 // pred_fallthru
      _
    %95 = vsyncpa [#allocation3], 1
    %96 = vsyncpa [#allocation6], 1
    %97 = vsyncpa [#allocation4], 1

</llo_original>
